<compile_context>
chip_gen: v7x
topology: tpu7x:2x2x1
jax: 0.10.0
libtpu: 0.0.40
codegen_flags: <defaults>
</compile_context>

<pallas_src>
import functools

import jax
import jax.numpy as jnp
from jax.experimental import pallas as pl
from jax.experimental.pallas import tpu as pltpu

_LANE = 128
_DEFAULT_BLOCK_ELEMS = 256 * 1024  # ~1 MiB of f32 per input block


def _focal_kernel(*refs, hw, has_mask):
    if has_mask:
        (pred_ref, gt_ref, mask_ref,
         pos_out, neg_out, npos_out,
         pos_acc, neg_acc, npos_acc) = refs
    else:
        (pred_ref, gt_ref,
         pos_out, neg_out, npos_out,
         pos_acc, neg_acc, npos_acc) = refs
        mask_ref = None

    h = pl.program_id(1)

    @pl.when(h == 0)
    def _init():
        pos_acc[...] = jnp.zeros_like(pos_acc)
        neg_acc[...] = jnp.zeros_like(neg_acc)
        npos_acc[...] = jnp.zeros_like(npos_acc)

    pred = pred_ref[...].astype(jnp.float32)   # (b_blk, C, hw_blk)
    gt = gt_ref[...].astype(jnp.float32)
    m = mask_ref[...].astype(jnp.float32) if has_mask else None  # (b_blk,1,hw_blk)

    hw_blk = pred_ref.shape[-1]
    if hw % hw_blk != 0:
        # Ragged tail: mask out lanes past the real H*W extent (trace-time branch).
        lane = jax.lax.broadcasted_iota(jnp.int32, (1, 1, hw_blk), 2)
        valid = (lane + h * hw_blk) < hw
        pred = jnp.where(valid, pred, jnp.float32(0.5))  # safe finite log
        gt = jnp.where(valid, gt, jnp.float32(0.0))
        vf = valid.astype(jnp.float32)
        m = vf if m is None else m * vf

    pos_b = gt == 1.0
    pos = pos_b.astype(jnp.float32)
    neg = (gt < 1.0).astype(jnp.float32)
    om = 1.0 - pred
    s = 1.0 - gt
    nw = (s * s) * (s * s)                      # (1 - gt)^4
    lg = jnp.log(jnp.where(pos_b, pred, om))    # single EUP log per element

    pos_l = lg * (om * om) * pos
    neg_l = lg * (pred * pred) * nw * neg
    npos_l = pos
    if m is not None:
        pos_l = pos_l * m
        neg_l = neg_l * m
        npos_l = pos * m

    # VPU-only per-block accumulation (also improves summation accuracy).
    pos_acc[...] += pos_l
    neg_acc[...] += neg_l
    npos_acc[...] += npos_l

    @pl.when(h == pl.num_programs(1) - 1)
    def _fin():
        pos_out[...] = jnp.sum(pos_acc[...]).reshape(1, 1, 1)
        neg_out[...] = jnp.sum(neg_acc[...]).reshape(1, 1, 1)
        npos_out[...] = jnp.sum(npos_acc[...]).reshape(1, 1, 1)


def _pick_blocks(B, C, HW, target_elems):
    """Choose (b_blk, hw_blk): big lane-dense blocks, hw_blk multiple of 128 or == HW."""
    if C * HW <= target_elems:
        hw_blk = HW
        b_blk = 1
        for d in range(B, 0, -1):          # largest divisor of B fitting the budget
            if B % d == 0 and d * C * HW <= target_elems:
                b_blk = d
                break
    else:
        b_blk = 1
        hw_blk = max(_LANE, (target_elems // C) // _LANE * _LANE)
    return b_blk, hw_blk


@functools.partial(jax.jit, static_argnames=("b_blk", "hw_blk"))
def _focal_impl(pred, gt, mask, *, b_blk, hw_blk):
    B, C, H, W = pred.shape
    HW = H * W
    has_mask = mask is not None

    pred3 = pred.reshape(B, C, HW)              # free reshapes (contiguous)
    gt3 = gt.reshape(B, C, HW)

    nb = B // b_blk
    n_hw = -(-HW // hw_blk)
    grid = (nb, n_hw)

    io_spec = pl.BlockSpec((b_blk, C, hw_blk), lambda bb, h: (bb, 0, h))
    out_spec = pl.BlockSpec((1, 1, 1), lambda bb, h: (bb, 0, 0))
    out_shape = jax.ShapeDtypeStruct((nb, 1, 1), jnp.float32)

    in_specs = [io_spec, io_spec]
    args = [pred3, gt3]
    if has_mask:
        mask3 = mask.reshape(B, 1, HW)          # NOT broadcast over C
        in_specs.append(pl.BlockSpec((b_blk, 1, hw_blk), lambda bb, h: (bb, 0, h)))
        args.append(mask3)

    kernel = functools.partial(_focal_kernel, hw=HW, has_mask=has_mask)

    pos_p, neg_p, npos_p = pl.pallas_call(
        kernel,
        grid=grid,
        in_specs=in_specs,
        out_specs=(out_spec, out_spec, out_spec),
        out_shape=(out_shape, out_shape, out_shape),
        scratch_shapes=[
            pltpu.VMEM((b_blk, C, hw_blk), jnp.float32),
            pltpu.VMEM((b_blk, C, hw_blk), jnp.float32),
            pltpu.VMEM((b_blk, C, hw_blk), jnp.float32),
        ],
        compiler_params=pltpu.CompilerParams(
            dimension_semantics=("parallel", "arbitrary")),
    )(*args)

    pos_sum = jnp.sum(pos_p)
    neg_sum = jnp.sum(neg_p)
    num_pos = jnp.sum(npos_p)
    safe_den = jnp.where(num_pos == 0, jnp.float32(1.0), num_pos)
    return jnp.where(num_pos == 0, -neg_sum, -(pos_sum + neg_sum) / safe_den)


def focal_loss_centernet(pred, gt, mask=None, *,
                         target_block_elems=_DEFAULT_BLOCK_ELEMS):
    """Forward pass of FocalLossCenterNet.

    pred, gt: (B, C, H, W); pred expected strictly in (0, 1).
    mask:     optional (B, H, W) (broadcast over C like the PyTorch code).
    Returns a scalar float32 loss.
    """
    B, C, H, W = pred.shape
    b_blk, hw_blk = _pick_blocks(B, C, H * W, target_block_elems)
    return _focal_impl(pred, gt, mask, b_blk=b_blk, hw_blk=hw_blk)


def _reference(pred, gt, mask=None):
    pred = pred.astype(jnp.float32)
    gt = gt.astype(jnp.float32)
    pos_inds = (gt == 1.0).astype(jnp.float32)
    neg_inds = (gt < 1.0).astype(jnp.float32)
    neg_weights = (1.0 - gt) ** 4
    pos_loss = jnp.log(pred) * (1.0 - pred) ** 2 * pos_inds
    neg_loss = jnp.log(1.0 - pred) * pred ** 2 * neg_weights * neg_inds
    if mask is not None:
        m = mask.astype(jnp.float32)[:, None, :, :]
        pos_loss = pos_loss * m
        neg_loss = neg_loss * m
        num_pos = (pos_inds * m).sum()
    else:
        num_pos = pos_inds.sum()
    pos_loss = pos_loss.sum()
    neg_loss = neg_loss.sum()
    safe_den = jnp.where(num_pos == 0, 1.0, num_pos)
    return jnp.where(num_pos == 0, -neg_loss, -(pos_loss + neg_loss) / safe_den)


if __name__ == "__main__":
    key = jax.random.PRNGKey(0)
    k1, k2, k3, k4 = jax.random.split(key, 4)

    B, C, H, W = 2, 4, 16, 16
    pred = jax.nn.sigmoid(jax.random.normal(k1, (B, C, H, W), jnp.float32))
    gt = jax.random.uniform(k2, (B, C, H, W), jnp.float32, 0.0, 0.95)
    peak = jax.random.bernoulli(k3, 0.02, (B, C, H, W))
    gt = jnp.where(peak, jnp.float32(1.0), gt)
    mask = jax.random.bernoulli(k4, 0.8, (B, H, W)).astype(jnp.float32)

    # with mask (single-block path)
    loss = jax.block_until_ready(focal_loss_centernet(pred, gt, mask))
    ref = _reference(pred, gt, mask)
    assert jnp.allclose(loss, ref, rtol=1e-4, atol=1e-4), (loss, ref)

    # without mask (no mask streamed at all)
    loss_nm = jax.block_until_ready(focal_loss_centernet(pred, gt, None))
    ref_nm = _reference(pred, gt, None)
    assert jnp.allclose(loss_nm, ref_nm, rtol=1e-4, atol=1e-4), (loss_nm, ref_nm)

    # multi-block path with ragged H*W tail (tiny target block forces tiling)
    B2, C2, H2, W2 = 2, 3, 20, 20
    k5, k6, k7, k8 = jax.random.split(jax.random.PRNGKey(1), 4)
    pred2 = jax.nn.sigmoid(jax.random.normal(k5, (B2, C2, H2, W2), jnp.float32))
    gt2 = jax.random.uniform(k6, (B2, C2, H2, W2), jnp.float32, 0.0, 0.95)
    peak2 = jax.random.bernoulli(k7, 0.05, (B2, C2, H2, W2))
    gt2 = jnp.where(peak2, jnp.float32(1.0), gt2)
    mask2 = jax.random.bernoulli(k8, 0.7, (B2, H2, W2)).astype(jnp.float32)
    loss_t = jax.block_until_ready(
        focal_loss_centernet(pred2, gt2, mask2, target_block_elems=400))
    ref_t = _reference(pred2, gt2, mask2)
    assert jnp.allclose(loss_t, ref_t, rtol=1e-4, atol=1e-4), (loss_t, ref_t)

    print("KERNEL_OK")
</pallas_src>

<mosaic_0001>
module attributes {stable_mosaic.version = 11 : i64} {
  func.func @_focal_kernel(%arg0: i32, %arg1: i32, %arg2: memref<2x4x256xf32, #tpu.memory_space<vmem>>, %arg3: memref<2x4x256xf32, #tpu.memory_space<vmem>>, %arg4: memref<2x1x256xf32, #tpu.memory_space<vmem>>, %arg5: memref<1x1x1xf32, #tpu.memory_space<vmem>>, %arg6: memref<1x1x1xf32, #tpu.memory_space<vmem>>, %arg7: memref<1x1x1xf32, #tpu.memory_space<vmem>>, %arg8: memref<2x4x256xf32, #tpu.memory_space<vmem>>, %arg9: memref<2x4x256xf32, #tpu.memory_space<vmem>>, %arg10: memref<2x4x256xf32, #tpu.memory_space<vmem>>) attributes {dimension_semantics = [#tpu.dimension_semantics<parallel>, #tpu.dimension_semantics<arbitrary>], iteration_bounds = array<i64: 1, 1>, scalar_prefetch = 0 : i64, scratch_operands = 3 : i64, tpu.core_type = #tpu.core_type<tc>, window_params = [{transform_indices = @transform_0, window_bounds = array<i64: 2, 4, 256>}, {transform_indices = @transform_1, window_bounds = array<i64: 2, 4, 256>}, {transform_indices = @transform_2, window_bounds = array<i64: 2, 1, 256>}, {transform_indices = @transform_3, window_bounds = array<i64: 1, 1, 1>}, {transform_indices = @transform_4, window_bounds = array<i64: 1, 1, 1>}, {transform_indices = @transform_5, window_bounds = array<i64: 1, 1, 1>}]} {
    %c0_i32 = arith.constant 0 : i32
    %0 = arith.cmpi eq, %arg1, %c0_i32 : i32
    %1 = arith.extui %0 : i1 to i32
    %c0_i32_0 = arith.constant 0 : i32
    %2 = arith.cmpi ne, %1, %c0_i32_0 : i32
    scf.if %2 {
      %cst_32 = arith.constant 0.000000e+00 : f32
      %48 = vector.broadcast %cst_32 : f32 to vector<2x4x256xf32>
      %c0_33 = arith.constant 0 : index
      %c0_34 = arith.constant 0 : index
      %c0_35 = arith.constant 0 : index
      %49 = vector.load %arg8[%c0_33, %c0_34, %c0_35] : memref<2x4x256xf32, #tpu.memory_space<vmem>>, vector<2x4x256xf32>
      tpu.vector_store %arg8[%c0_33, %c0_34, %c0_35], %48 {strides = array<i32>} : memref<2x4x256xf32, #tpu.memory_space<vmem>>, vector<2x4x256xf32>,
      %cst_36 = arith.constant 0.000000e+00 : f32
      %50 = vector.broadcast %cst_36 : f32 to vector<2x4x256xf32>
      %c0_37 = arith.constant 0 : index
      %c0_38 = arith.constant 0 : index
      %c0_39 = arith.constant 0 : index
      %51 = vector.load %arg9[%c0_37, %c0_38, %c0_39] : memref<2x4x256xf32, #tpu.memory_space<vmem>>, vector<2x4x256xf32>
      tpu.vector_store %arg9[%c0_37, %c0_38, %c0_39], %50 {strides = array<i32>} : memref<2x4x256xf32, #tpu.memory_space<vmem>>, vector<2x4x256xf32>,
      %cst_40 = arith.constant 0.000000e+00 : f32
      %52 = vector.broadcast %cst_40 : f32 to vector<2x4x256xf32>
      %c0_41 = arith.constant 0 : index
      %c0_42 = arith.constant 0 : index
      %c0_43 = arith.constant 0 : index
      %53 = vector.load %arg10[%c0_41, %c0_42, %c0_43] : memref<2x4x256xf32, #tpu.memory_space<vmem>>, vector<2x4x256xf32>
      tpu.vector_store %arg10[%c0_41, %c0_42, %c0_43], %52 {strides = array<i32>} : memref<2x4x256xf32, #tpu.memory_space<vmem>>, vector<2x4x256xf32>,
    } else {
    }
    %c0 = arith.constant 0 : index
    %c0_1 = arith.constant 0 : index
    %c0_2 = arith.constant 0 : index
    %3 = vector.load %arg2[%c0, %c0_1, %c0_2] : memref<2x4x256xf32, #tpu.memory_space<vmem>>, vector<2x4x256xf32>
    %c0_3 = arith.constant 0 : index
    %c0_4 = arith.constant 0 : index
    %c0_5 = arith.constant 0 : index
    %4 = vector.load %arg3[%c0_3, %c0_4, %c0_5] : memref<2x4x256xf32, #tpu.memory_space<vmem>>, vector<2x4x256xf32>
    %c0_6 = arith.constant 0 : index
    %c0_7 = arith.constant 0 : index
    %c0_8 = arith.constant 0 : index
    %5 = vector.load %arg4[%c0_6, %c0_7, %c0_8] : memref<2x1x256xf32, #tpu.memory_space<vmem>>, vector<2x1x256xf32>
    %cst = arith.constant 1.000000e+00 : f32
    %6 = vector.broadcast %cst : f32 to vector<2x4x256xf32>
    %7 = arith.cmpf oeq, %4, %6 : vector<2x4x256xf32>
    %8 = arith.extui %7 : vector<2x4x256xi1> to vector<2x4x256xi32>
    %9 = arith.sitofp %8 : vector<2x4x256xi32> to vector<2x4x256xf32>
    %cst_9 = arith.constant 1.000000e+00 : f32
    %10 = vector.broadcast %cst_9 : f32 to vector<2x4x256xf32>
    %11 = arith.cmpf olt, %4, %10 : vector<2x4x256xf32>
    %12 = arith.extui %11 : vector<2x4x256xi1> to vector<2x4x256xi32>
    %13 = arith.sitofp %12 : vector<2x4x256xi32> to vector<2x4x256xf32>
    %cst_10 = arith.constant 1.000000e+00 : f32
    %14 = vector.broadcast %cst_10 : f32 to vector<2x4x256xf32>
    %15 = arith.subf %14, %3 : vector<2x4x256xf32>
    %cst_11 = arith.constant 1.000000e+00 : f32
    %16 = vector.broadcast %cst_11 : f32 to vector<2x4x256xf32>
    %17 = arith.subf %16, %4 : vector<2x4x256xf32>
    %18 = arith.mulf %17, %17 : vector<2x4x256xf32>
    %19 = arith.mulf %17, %17 : vector<2x4x256xf32>
    %20 = arith.mulf %18, %19 : vector<2x4x256xf32>
    %21 = arith.select %7, %3, %15 : vector<2x4x256xi1>, vector<2x4x256xf32>
    %22 = math.log %21 : vector<2x4x256xf32>
    %23 = arith.mulf %15, %15 : vector<2x4x256xf32>
    %24 = arith.mulf %22, %23 : vector<2x4x256xf32>
    %25 = arith.mulf %24, %9 : vector<2x4x256xf32>
    %26 = arith.mulf %3, %3 : vector<2x4x256xf32>
    %27 = arith.mulf %22, %26 : vector<2x4x256xf32>
    %28 = arith.mulf %27, %20 : vector<2x4x256xf32>
    %29 = arith.mulf %28, %13 : vector<2x4x256xf32>
    %30 = vector.broadcast %5 : vector<2x1x256xf32> to vector<2x4x256xf32>
    %31 = arith.mulf %25, %30 : vector<2x4x256xf32>
    %32 = vector.broadcast %5 : vector<2x1x256xf32> to vector<2x4x256xf32>
    %33 = arith.mulf %29, %32 : vector<2x4x256xf32>
    %34 = vector.broadcast %5 : vector<2x1x256xf32> to vector<2x4x256xf32>
    %35 = arith.mulf %9, %34 : vector<2x4x256xf32>
    %c0_12 = arith.constant 0 : index
    %c0_13 = arith.constant 0 : index
    %c0_14 = arith.constant 0 : index
    %36 = vector.load %arg8[%c0_12, %c0_13, %c0_14] : memref<2x4x256xf32, #tpu.memory_space<vmem>>, vector<2x4x256xf32>
    %37 = arith.addf %36, %31 : vector<2x4x256xf32>
    %c0_15 = arith.constant 0 : index
    %c0_16 = arith.constant 0 : index
    %c0_17 = arith.constant 0 : index
    %38 = vector.load %arg8[%c0_15, %c0_16, %c0_17] : memref<2x4x256xf32, #tpu.memory_space<vmem>>, vector<2x4x256xf32>
    tpu.vector_store %arg8[%c0_15, %c0_16, %c0_17], %37 {strides = array<i32>} : memref<2x4x256xf32, #tpu.memory_space<vmem>>, vector<2x4x256xf32>,
    %c0_18 = arith.constant 0 : index
    %c0_19 = arith.constant 0 : index
    %c0_20 = arith.constant 0 : index
    %39 = vector.load %arg9[%c0_18, %c0_19, %c0_20] : memref<2x4x256xf32, #tpu.memory_space<vmem>>, vector<2x4x256xf32>
    %40 = arith.addf %39, %33 : vector<2x4x256xf32>
    %c0_21 = arith.constant 0 : index
    %c0_22 = arith.constant 0 : index
    %c0_23 = arith.constant 0 : index
    %41 = vector.load %arg9[%c0_21, %c0_22, %c0_23] : memref<2x4x256xf32, #tpu.memory_space<vmem>>, vector<2x4x256xf32>
    tpu.vector_store %arg9[%c0_21, %c0_22, %c0_23], %40 {strides = array<i32>} : memref<2x4x256xf32, #tpu.memory_space<vmem>>, vector<2x4x256xf32>,
    %c0_24 = arith.constant 0 : index
    %c0_25 = arith.constant 0 : index
    %c0_26 = arith.constant 0 : index
    %42 = vector.load %arg10[%c0_24, %c0_25, %c0_26] : memref<2x4x256xf32, #tpu.memory_space<vmem>>, vector<2x4x256xf32>
    %43 = arith.addf %42, %35 : vector<2x4x256xf32>
    %c0_27 = arith.constant 0 : index
    %c0_28 = arith.constant 0 : index
    %c0_29 = arith.constant 0 : index
    %44 = vector.load %arg10[%c0_27, %c0_28, %c0_29] : memref<2x4x256xf32, #tpu.memory_space<vmem>>, vector<2x4x256xf32>
    tpu.vector_store %arg10[%c0_27, %c0_28, %c0_29], %43 {strides = array<i32>} : memref<2x4x256xf32, #tpu.memory_space<vmem>>, vector<2x4x256xf32>,
    %c0_i32_30 = arith.constant 0 : i32
    %45 = arith.cmpi eq, %arg1, %c0_i32_30 : i32
    %46 = arith.extui %45 : i1 to i32
    %c0_i32_31 = arith.constant 0 : i32
    %47 = arith.cmpi ne, %46, %c0_i32_31 : i32
    scf.if %47 {
      %c0_32 = arith.constant 0 : index
      %c0_33 = arith.constant 0 : index
      %c0_34 = arith.constant 0 : index
      %48 = vector.load %arg8[%c0_32, %c0_33, %c0_34] : memref<2x4x256xf32, #tpu.memory_space<vmem>>, vector<2x4x256xf32>
      %49 = vector.shape_cast %48 : vector<2x4x256xf32> to vector<1x2x4x256xf32>
      %cst_35 = arith.constant dense<0.000000e+00> : vector<1xf32>
      %50 = vector.multi_reduction <add>, %49, %cst_35 [1, 2, 3] : vector<1x2x4x256xf32> to vector<1xf32>
      %51 = vector.shape_cast %50 : vector<1xf32> to vector<1x1x1x1xf32>
      %52 = vector.extract %51[0, 0, 0, 0] : f32 from vector<1x1x1x1xf32>
      %53 = vector.broadcast %52 : f32 to vector<1x1x1xf32>
      %c0_36 = arith.constant 0 : index
      %c0_37 = arith.constant 0 : index
      %c0_38 = arith.constant 0 : index
      %54 = vector.load %arg5[%c0_36, %c0_37, %c0_38] : memref<1x1x1xf32, #tpu.memory_space<vmem>>, vector<1x1x1xf32>
      tpu.vector_store %arg5[%c0_36, %c0_37, %c0_38], %53 {strides = array<i32>} : memref<1x1x1xf32, #tpu.memory_space<vmem>>, vector<1x1x1xf32>,
      %c0_39 = arith.constant 0 : index
      %c0_40 = arith.constant 0 : index
      %c0_41 = arith.constant 0 : index
      %55 = vector.load %arg9[%c0_39, %c0_40, %c0_41] : memref<2x4x256xf32, #tpu.memory_space<vmem>>, vector<2x4x256xf32>
      %56 = vector.shape_cast %55 : vector<2x4x256xf32> to vector<1x2x4x256xf32>
      %cst_42 = arith.constant dense<0.000000e+00> : vector<1xf32>
      %57 = vector.multi_reduction <add>, %56, %cst_42 [1, 2, 3] : vector<1x2x4x256xf32> to vector<1xf32>
      %58 = vector.shape_cast %57 : vector<1xf32> to vector<1x1x1x1xf32>
      %59 = vector.extract %58[0, 0, 0, 0] : f32 from vector<1x1x1x1xf32>
      %60 = vector.broadcast %59 : f32 to vector<1x1x1xf32>
      %c0_43 = arith.constant 0 : index
      %c0_44 = arith.constant 0 : index
      %c0_45 = arith.constant 0 : index
      %61 = vector.load %arg6[%c0_43, %c0_44, %c0_45] : memref<1x1x1xf32, #tpu.memory_space<vmem>>, vector<1x1x1xf32>
      tpu.vector_store %arg6[%c0_43, %c0_44, %c0_45], %60 {strides = array<i32>} : memref<1x1x1xf32, #tpu.memory_space<vmem>>, vector<1x1x1xf32>,
      %c0_46 = arith.constant 0 : index
      %c0_47 = arith.constant 0 : index
      %c0_48 = arith.constant 0 : index
      %62 = vector.load %arg10[%c0_46, %c0_47, %c0_48] : memref<2x4x256xf32, #tpu.memory_space<vmem>>, vector<2x4x256xf32>
      %63 = vector.shape_cast %62 : vector<2x4x256xf32> to vector<1x2x4x256xf32>
      %cst_49 = arith.constant dense<0.000000e+00> : vector<1xf32>
      %64 = vector.multi_reduction <add>, %63, %cst_49 [1, 2, 3] : vector<1x2x4x256xf32> to vector<1xf32>
      %65 = vector.shape_cast %64 : vector<1xf32> to vector<1x1x1x1xf32>
      %66 = vector.extract %65[0, 0, 0, 0] : f32 from vector<1x1x1x1xf32>
      %67 = vector.broadcast %66 : f32 to vector<1x1x1xf32>
      %c0_50 = arith.constant 0 : index
      %c0_51 = arith.constant 0 : index
      %c0_52 = arith.constant 0 : index
      %68 = vector.load %arg7[%c0_50, %c0_51, %c0_52] : memref<1x1x1xf32, #tpu.memory_space<vmem>>, vector<1x1x1xf32>
      tpu.vector_store %arg7[%c0_50, %c0_51, %c0_52], %67 {strides = array<i32>} : memref<1x1x1xf32, #tpu.memory_space<vmem>>, vector<1x1x1xf32>,
    } else {
    }
    return
  }
  func.func @transform_0(%arg0: i32, %arg1: i32) -> (i32, i32, i32) {
    %c0_i32 = arith.constant 0 : i32
    %c0_i32_0 = arith.constant 0 : i32
    return %arg0, %c0_i32, %arg1 : i32, i32, i32
  }
  func.func @transform_1(%arg0: i32, %arg1: i32) -> (i32, i32, i32) {
    %c0_i32 = arith.constant 0 : i32
    %c0_i32_0 = arith.constant 0 : i32
    return %arg0, %c0_i32, %arg1 : i32, i32, i32
  }
  func.func @transform_2(%arg0: i32, %arg1: i32) -> (i32, i32, i32) {
    %c0_i32 = arith.constant 0 : i32
    %c0_i32_0 = arith.constant 0 : i32
    return %arg0, %c0_i32, %arg1 : i32, i32, i32
  }
  func.func @transform_3(%arg0: i32, %arg1: i32) -> (i32, i32, i32) {
    %c0_i32 = arith.constant 0 : i32
    %c0_i32_0 = arith.constant 0 : i32
    %c0_i32_1 = arith.constant 0 : i32
    return %arg0, %c0_i32, %c0_i32_0 : i32, i32, i32
  }
  func.func @transform_4(%arg0: i32, %arg1: i32) -> (i32, i32, i32) {
    %c0_i32 = arith.constant 0 : i32
    %c0_i32_0 = arith.constant 0 : i32
    %c0_i32_1 = arith.constant 0 : i32
    return %arg0, %c0_i32, %c0_i32_0 : i32, i32, i32
  }
  func.func @transform_5(%arg0: i32, %arg1: i32) -> (i32, i32, i32) {
    %c0_i32 = arith.constant 0 : i32
    %c0_i32_0 = arith.constant 0 : i32
    %c0_i32_1 = arith.constant 0 : i32
    return %arg0, %c0_i32, %c0_i32_0 : i32, i32, i32
  }
}

</mosaic_0001>

<llo_original>
// kernel: _focal_impl.1
$region0: #{_focal_impl.1}
  #allocation0 [shape = 'u32[]', space=smem, size = 0x4, offset = 0x4, fixed_abs, tag = 'smem constant byte address 0x4 - core index']
  #allocation1 [shape = 'u32[144,128]{1,0:T(1,128)}', space=vmem, size = 0x12000, scoped, tag = 'internal scratch']
  #allocation2 [shape = 'f32[2,4,256]{2,1,0:T(4,128)}', space=vmem, size = 0x2000, scoped, tag = 'scratch operand']
  #allocation3 [shape = 'f32[2,4,256]{2,1,0:T(4,128)}', space=vmem, size = 0x2000, scoped, tag = 'scratch operand']
  #allocation4 [shape = 'f32[2,4,256]{2,1,0:T(4,128)}', space=vmem, size = 0x2000, scoped, tag = 'scratch operand']
  %s0 = inlined_call_operand.vmem [shape: f32[2,4,256], index: 0, kind: input, shape index: {}]
  %s1 = inlined_call_operand.vmem [shape: f32[2,4,256], index: 1, kind: input, shape index: {}]
  %s2 = inlined_call_operand.vmem [shape: f32[2,1,256], index: 2, kind: input, shape index: {}]
  %s3 = inlined_call_operand.hbm [shape: f32[1,1,1], index: 3, kind: output, shape index: {0}]
  %s4 = inlined_call_operand.hbm [shape: f32[1,1,1], index: 4, kind: output, shape index: {1}]
  %s5 = inlined_call_operand.hbm [shape: f32[1,1,1], index: 5, kind: output, shape index: {2}]
  %6 = xla_tuple %s3, %s4, %s5
  %s7 = sld [smem:[#allocation0]]
  $region46: #{_focal_impl.1} parent=0
    _
  %s9 = ssub.s32 1, %s7
  %s10 = scalar_select 0, %s9, %s7
  $region1: #{_focal_impl.1} parent=0
    #allocation5 [shape = 'u8[512]{0}', space=vmem, size = 0x400, scoped, tag = 'output window, operand 0, single buffered']
    #allocation6 [shape = 's32[1]{0}', space=sflag, size = 0x4, scoped, tag = 'scoped memory for _focal_impl.1']
    #allocation7 [shape = 'u8[512]{0}', space=vmem, size = 0x400, scoped, tag = 'output window, operand 1, single buffered']
    #allocation8 [shape = 's32[1]{0}', space=sflag, size = 0x4, scoped, tag = 'scoped memory for _focal_impl.1']
    #allocation9 [shape = 'u8[512]{0}', space=vmem, size = 0x400, scoped, tag = 'output window, operand 2, single buffered']
    %11 = vsyncpa [#allocation6], 0
    %12 = vsyncpa [#allocation8], 0
    // Predicated region
    $region2: #{_focal_impl.1} parent=1 // pred_check
      _
    $region3: #{_focal_impl.1} parent=1 // pred_check_branch
      %14 = sbr.rel (0) target = $region5
    $region4: #{_focal_impl.1} parent=1 // pred_region
      _
    $region5: #{_focal_impl.1} parent=1 // pred_fallthru
      _
    // Predicated region
    $region6: #{_focal_impl.1} parent=1 // pred_check
      _
    $region7: #{_focal_impl.1} parent=1 // pred_check_branch
      %16 = sbr.rel (0) target = $region9
    $region8: #{_focal_impl.1} parent=1 // pred_region
      _
    $region9: #{_focal_impl.1} parent=1 // pred_fallthru
      _
    // Predicated region
    $region10: #{_focal_impl.1} parent=1 // pred_check
      _
    $region11: #{_focal_impl.1} parent=1 // pred_check_branch
      %18 = sbr.rel (0) target = $region13
    $region12: #{_focal_impl.1} parent=1 // pred_region
      _
    $region13: #{_focal_impl.1} parent=1 // pred_fallthru
      _
    %p19 = scmp.eq.s32.totalorder 0, 0
    // Predicated region
    $region14: #{_focal_impl.1} parent=1 // pred_check
      %p20 = pneg %p19
    $region15: #{_focal_impl.1} parent=1 // pred_check_branch
      %22 = sbr.rel (%p20) target = $region17
    $region16: #{_focal_impl.1} parent=1 // pred_region
      %23 = vst [vmem:[#allocation2] sm:$0xff] 0.0
      %24 = vst [vmem:[#allocation2 + $0x8] sm:$0xff] 0.0
      %25 = vst [vmem:[#allocation3] sm:$0xff] 0.0
      %26 = vst [vmem:[#allocation3 + $0x8] sm:$0xff] 0.0
      %27 = vst [vmem:[#allocation4] sm:$0xff] 0.0
      %28 = vst [vmem:[#allocation4 + $0x8] sm:$0xff] 0.0
    $region17: #{_focal_impl.1} parent=1 // pred_fallthru
      _
    %v29 = vld [vmem:[%s0] sm:$0xff]
    %v30 = vld [vmem:[%s0 + $0x8] sm:$0xff]
    %v31 = vld [vmem:[%s1] sm:$0xff]
    %v32 = vld [vmem:[%s1 + $0x8] sm:$0xff]
    %v33 = vld [vmem:[%s2] sm:$0x3]
    %v34 = vld [vmem:[%s2 + $0x2] sm:$0x3]
    %vm35 = vcmp.eq.f32.partialorder %v31, 1.0
    %vm36 = vcmp.eq.f32.partialorder %v32, 1.0
    %v37 = vsel %vm35, 1, 0
    %v38 = vsel %vm36, 1, 0
    %v39 = vcvt.s32.f32 %v37
    %v40 = vcvt.s32.f32 %v38
    %vm41 = vcmp.lt.f32.partialorder %v31, 1.0
    %vm42 = vcmp.lt.f32.partialorder %v32, 1.0
    %v43 = vsel %vm41, 1, 0
    %v44 = vsel %vm42, 1, 0
    %v45 = vcvt.s32.f32 %v43
    %v46 = vcvt.s32.f32 %v44
    %v47 = vsub.f32 1.0, %v29
    %v48 = vsub.f32 1.0, %v30
    %v49 = vsub.f32 1.0, %v31
    %v50 = vsub.f32 1.0, %v32
    %v51 = vmul.f32 %v49, %v49
    %v52 = vmul.f32 %v50, %v50
    %v53 = vmul.f32 %v51, %v51
    %v54 = vmul.f32 %v52, %v52
    %v55 = vsel %vm35, %v29, %v47
    %v56 = vsel %vm36, %v30, %v48
    %v57 = vlog2.pop %v55
    %v58 = vmul.f32 %v57, 0.6931472
    %v59 = vlog2.pop %v56
    %v60 = vmul.f32 %v59, 0.6931472
    %v61 = vmul.f32 %v47, %v47
    %v62 = vmul.f32 %v48, %v48
    %v63 = vmul.f32 %v58, %v61
    %v64 = vmul.f32 %v60, %v62
    %v65 = vmul.f32 %v63, %v39
    %v66 = vmul.f32 %v64, %v40
    %v67 = vmul.f32 %v29, %v29
    %v68 = vmul.f32 %v30, %v30
    %v69 = vmul.f32 %v58, %v67
    %v70 = vmul.f32 %v60, %v68
    %v71 = vmul.f32 %v69, %v53
    %v72 = vmul.f32 %v70, %v54
    %v73 = vmul.f32 %v71, %v45
    %v74 = vmul.f32 %v72, %v46
    %v77 = vlaneseq
    %v78 = vshrl.u32 %v77, 7
    %v79 = vsub.s32 0, %v78
    %v80 = vrot.slane %v33, %v79
    %v81 = vlaneseq
    %v82 = vshrl.u32 %v81, 7
    %v83 = vsub.s32 1, %v82
    %v84 = vrot.slane %v33, %v83
    %v85 = vlaneseq
    %v86 = vshrl.u32 %v85, 7
    %v87 = vsub.s32 0, %v86
    %v88 = vrot.slane %v34, %v87
    %v89 = vlaneseq
    %v90 = vshrl.u32 %v89, 7
    %v91 = vsub.s32 1, %v90
    %v92 = vrot.slane %v34, %v91
    %v93 = vcombine.low %v80, %v84
    %v94 = vcombine.low %v88, %v92
    %v97 = vmul.f32 %v65, %v93
    %v98 = vmul.f32 %v66, %v94
    %v99 = vmul.f32 %v73, %v93
    %v100 = vmul.f32 %v74, %v94
    %v101 = vmul.f32 %v39, %v93
    %v102 = vmul.f32 %v40, %v94
    %v103 = vld [vmem:[#allocation2] sm:$0xff]
    %v104 = vld [vmem:[#allocation2 + $0x8] sm:$0xff]
    %v105 = vadd.f32 %v103, %v97
    %v106 = vadd.f32 %v104, %v98
    %107 = vst [vmem:[#allocation2] sm:$0xff] %v105
    %108 = vst [vmem:[#allocation2 + $0x8] sm:$0xff] %v106
    %v109 = vld [vmem:[#allocation3] sm:$0xff]
    %v110 = vld [vmem:[#allocation3 + $0x8] sm:$0xff]
    %v111 = vadd.f32 %v109, %v99
    %v112 = vadd.f32 %v110, %v100
    %113 = vst [vmem:[#allocation3] sm:$0xff] %v111
    %114 = vst [vmem:[#allocation3 + $0x8] sm:$0xff] %v112
    %v115 = vld [vmem:[#allocation4] sm:$0xff]
    %v116 = vld [vmem:[#allocation4 + $0x8] sm:$0xff]
    %v117 = vadd.f32 %v115, %v101
    %v118 = vadd.f32 %v116, %v102
    %119 = vst [vmem:[#allocation4] sm:$0xff] %v117
    %120 = vst [vmem:[#allocation4 + $0x8] sm:$0xff] %v118
    // Predicated region
    $region18: #{_focal_impl.1} parent=1 // pred_check
      %p121 = pneg %p19
    $region19: #{_focal_impl.1} parent=1 // pred_check_branch
      %123 = sbr.rel (%p121) target = $region21
    $region20: #{_focal_impl.1} parent=1 // pred_region
      %v124 = vld [vmem:[#allocation2] sm:$0xff]
      %v125 = vld [vmem:[#allocation2 + $0x8] sm:$0xff]
      %v128 = vcombine.high %v124, %v124
      %v129 = vcombine.high %v125, %v125
      %vm132 = vcmask 1043456
      %v133 = vsel %vm132, %v124, 0.0
      %v134 = vsel %vm132, %v128, 0.0
      %v135 = vadd.f32 %v133, %v134
      %v136 = vsel %vm132, %v125, 0.0
      %v137 = vadd.f32 %v135, %v136
      %v138 = vsel %vm132, %v129, 0.0
      %v139 = vadd.f32 %v137, %v138
      %140 = vadd.xlane.f32.xlu0 %v139
      %v141 = vpop.xlane.xlu0 %140
      %v142 = vrot.slane %v141, 4
      %v143 = vadd.f32 %v141, %v142
      %v144 = vrot.slane %v143, 2
      %v145 = vadd.f32 %v143, %v144
      %v146 = vrot.slane %v145, 1
      %v147 = vadd.f32 %v145, %v146
      %s148 = vtos %v147
      %v149 = vstv %s148
      %vm150 = vcmask 0
      %151 = vst.msk [vmem:[#allocation5] sm:$0x1] %vm150, %v149
      %v152 = vld [vmem:[#allocation3] sm:$0xff]
      %v153 = vld [vmem:[#allocation3 + $0x8] sm:$0xff]
      %v156 = vcombine.high %v152, %v152
      %v157 = vcombine.high %v153, %v153
      %v160 = vsel %vm132, %v152, 0.0
      %v161 = vsel %vm132, %v156, 0.0
      %v162 = vadd.f32 %v160, %v161
      %v163 = vsel %vm132, %v153, 0.0
      %v164 = vadd.f32 %v162, %v163
      %v165 = vsel %vm132, %v157, 0.0
      %v166 = vadd.f32 %v164, %v165
      %167 = vadd.xlane.f32.xlu0 %v166
      %v168 = vpop.xlane.xlu0 %167
      %v169 = vrot.slane %v168, 4
      %v170 = vadd.f32 %v168, %v169
      %v171 = vrot.slane %v170, 2
      %v172 = vadd.f32 %v170, %v171
      %v173 = vrot.slane %v172, 1
      %v174 = vadd.f32 %v172, %v173
      %s175 = vtos %v174
      %v176 = vstv %s175
      %177 = vst.msk [vmem:[#allocation7] sm:$0x1] %vm150, %v176
      %v178 = vld [vmem:[#allocation4] sm:$0xff]
      %v179 = vld [vmem:[#allocation4 + $0x8] sm:$0xff]
      %v182 = vcombine.high %v178, %v178
      %v183 = vcombine.high %v179, %v179
      %v186 = vsel %vm132, %v178, 0.0
      %v187 = vsel %vm132, %v182, 0.0
      %v188 = vadd.f32 %v186, %v187
      %v189 = vsel %vm132, %v179, 0.0
      %v190 = vadd.f32 %v188, %v189
      %v191 = vsel %vm132, %v183, 0.0
      %v192 = vadd.f32 %v190, %v191
      %193 = vadd.xlane.f32.xlu0 %v192
      %v194 = vpop.xlane.xlu0 %193
      %v195 = vrot.slane %v194, 4
      %v196 = vadd.f32 %v194, %v195
      %v197 = vrot.slane %v196, 2
      %v198 = vadd.f32 %v196, %v197
      %v199 = vrot.slane %v198, 1
      %v200 = vadd.f32 %v198, %v199
      %s201 = vtos %v200
      %v202 = vstv %s201
      %203 = vst.msk [vmem:[#allocation9] sm:$0x1] %vm150, %v202
    $region21: #{_focal_impl.1} parent=1 // pred_fallthru
      _
    // Predicated region
    $region22: #{_focal_impl.1} parent=1 // pred_check
      _
    $region23: #{_focal_impl.1} parent=1 // pred_check_branch
      %205 = sbr.rel (0) target = $region25
    $region24: #{_focal_impl.1} parent=1 // pred_region
      %s207 = ssub.s32 16, 16
      %208 = vsyncadd [#allocation6], %s207
      %s210 = sshll.u32 [#allocation5], 4
      %s211 = int_to_ptr.vmem [resolvable:$true] %s210
      %213 = dma.vmem_to_hbm [thread:$0]  %s211, 16, %s3, [#allocation6]
    $region25: #{_focal_impl.1} parent=1 // pred_fallthru
      _
    // Predicated region
    $region26: #{_focal_impl.1} parent=1 // pred_check
      _
    $region27: #{_focal_impl.1} parent=1 // pred_check_branch
      %215 = sbr.rel (0) target = $region29
    $region28: #{_focal_impl.1} parent=1 // pred_region
      %s217 = ssub.s32 16, 16
      %218 = vsyncadd [#allocation8], %s217
      %s220 = sshll.u32 [#allocation7], 4
      %s221 = int_to_ptr.vmem [resolvable:$true] %s220
      %223 = dma.vmem_to_hbm [thread:$0]  %s221, 16, %s4, [#allocation8]
    $region29: #{_focal_impl.1} parent=1 // pred_fallthru
      _
    // Predicated region
    $region30: #{_focal_impl.1} parent=1 // pred_check
      _
    $region31: #{_focal_impl.1} parent=1 // pred_check_branch
      %225 = sbr.rel (0) target = $region33
    $region32: #{_focal_impl.1} parent=1 // pred_region
      %s227 = ssub.s32 16, 16
      %228 = vsyncadd [#allocation8], %s227
      %s230 = sshll.u32 [#allocation9], 4
      %s231 = int_to_ptr.vmem [resolvable:$true] %s230
      %233 = dma.vmem_to_hbm [thread:$0]  %s231, 16, %s5, [#allocation8]
    $region33: #{_focal_impl.1} parent=1 // pred_fallthru
      _
    // Predicated region
    $region34: #{_focal_impl.1} parent=1 // pred_check
      _
    $region35: #{_focal_impl.1} parent=1 // pred_check_branch
      %235 = sbr.rel (0) target = $region37
    $region36: #{_focal_impl.1} parent=1 // pred_region
      %236 = dma.done [#allocation6], 16
    $region37: #{_focal_impl.1} parent=1 // pred_fallthru
      _
    // Predicated region
    $region38: #{_focal_impl.1} parent=1 // pred_check
      _
    $region39: #{_focal_impl.1} parent=1 // pred_check_branch
      %238 = sbr.rel (0) target = $region41
    $region40: #{_focal_impl.1} parent=1 // pred_region
      %239 = dma.done [#allocation8], 16
    $region41: #{_focal_impl.1} parent=1 // pred_fallthru
      _
    // Predicated region
    $region42: #{_focal_impl.1} parent=1 // pred_check
      _
    $region43: #{_focal_impl.1} parent=1 // pred_check_branch
      %241 = sbr.rel (0) target = $region45
    $region44: #{_focal_impl.1} parent=1 // pred_region
      %242 = dma.done [#allocation8], 16
    $region45: #{_focal_impl.1} parent=1 // pred_fallthru
      _
    %243 = vsyncpa [#allocation6], 1
    %244 = vsyncpa [#allocation8], 1

</llo_original>
